<compile_context>
chip_gen: v6e
topology: v6e:2x2x1
jax: 0.10.0
libtpu: 0.0.40
codegen_flags: <defaults>
</compile_context>

<pallas_src>
import jax
import jax.numpy as jnp
from jax.experimental import pallas as pl
from jax.experimental.pallas import tpu as pltpu

# ---- small, module-consistent sizes -----------------------------------------
B = 2              # batch
S = 8              # encoder sequence length
H = 32             # encoder hidden size (== GRU input & hidden size)
NUM_CLASSES = 16   # fc output classes
TARGET_LEN = 8     # self.len
VOCAB = 64         # synthetic embedding vocab
CLS_TOKEN_ID = 2   # self.cls_token_id


# ---- single fused kernel -----------------------------------------------------
def fused_kernel(ids_ref, table_ref, b_enc_ref,
                 w0_ref, b0_ref, wg_ref, bg_ref,
                 wfc_ref, bfc_ref, out_ref):
    # --- h0 = tanh(embed(last token) @ w_enc + b_enc), table@w_enc pre-folded -
    ids = ids_ref[...]                                            # (B, 1) i32
    tok_iota = jax.lax.broadcasted_iota(jnp.int32, (B, VOCAB), 1)
    onehot = (tok_iota == ids).astype(jnp.float32)                # (B, VOCAB)
    h = jnp.tanh(jnp.dot(onehot, table_ref[...],
                         preferred_element_type=jnp.float32)
                 + b_enc_ref[...])                                # (B, H)

    # hoist weight loads out of the unrolled loop
    w0 = w0_ref[...]          # (H, 4H): [Whr | Whz | 0   | Whn]   (step 0)
    b0 = b0_ref[...]          # (1, 4H): [gi0_r+bhr | gi0_z+bhz | gi0_n | bhn]
    wg = wg_ref[...]          # (H, 4H): [Wir+Whr | Wiz+Whz | Win | Whn] (t>=1)
    bg = bg_ref[...]          # (1, 4H): [bir+bhr | biz+bhz | bin | bhn]

    # --- 8-step GRU recurrence: ONE (2,32)@(32,128) matmul per step -----------
    hs = []
    for t in range(TARGET_LEN):
        w = w0 if t == 0 else wg
        b = b0 if t == 0 else bg
        g = jnp.dot(h, w, preferred_element_type=jnp.float32) + b  # (B, 4H)
        r = jax.nn.sigmoid(g[:, 0:H])
        z = jax.nn.sigmoid(g[:, H:2 * H])
        n = jnp.tanh(g[:, 2 * H:3 * H] + r * g[:, 3 * H:4 * H])
        h = (1.0 - z) * n + z * h
        hs.append(h)

    # --- fc head hoisted: one block-diagonal matmul, one lane-dense store -----
    h_all = jnp.concatenate(hs, axis=1)                           # (B, T*H)
    out_ref[...] = (jnp.dot(h_all, wfc_ref[...],
                            preferred_element_type=jnp.float32)
                    + bfc_ref[...])                               # (B, T*C)


def fused_forward(ids_last, kp):
    vmem = pl.BlockSpec(memory_space=pltpu.MemorySpace.VMEM)
    return pl.pallas_call(
        fused_kernel,
        out_shape=jax.ShapeDtypeStruct((B, TARGET_LEN * NUM_CLASSES),
                                       jnp.float32),
        in_specs=[vmem] * 9,
        out_specs=vmem,
    )(ids_last, kp["fused_table"], kp["b_enc"],
      kp["w_step0"], kp["b_step0"], kp["w_gates"], kp["b_gates"],
      kp["w_fc_big"], kp["b_fc_big"])


# ---- full forward (thin JAX glue) --------------------------------------------
@jax.jit
def date_conversion_forward(input_ids, attention_mask, kernel_params):
    del attention_mask  # unused by the token-wise encoder stand-in
    ids_last = input_ids[:, -1].reshape(B, 1).astype(jnp.int32)
    out_flat = fused_forward(ids_last, kernel_params)             # (B, T*C)
    return out_flat.reshape(B, TARGET_LEN, NUM_CLASSES)           # (B, T, C)


# ---- deterministic base parameters (torch-style layouts) ----------------------
def init_params(key):
    ks = jax.random.split(key, 8)
    scale = 1.0 / jnp.sqrt(jnp.float32(H))
    u = lambda k, shape: jax.random.uniform(k, shape, jnp.float32, -scale, scale)
    return {
        "embedding": jax.random.normal(ks[0], (VOCAB, H), jnp.float32) * 0.02,
        "w_enc": u(ks[1], (H, H)),                 # stand-in encoder dense
        "b_enc": jnp.zeros((H,), jnp.float32),
        "w_ih": u(ks[2], (3 * H, H)),              # torch.nn.GRU layout [r|z|n]
        "w_hh": u(ks[3], (3 * H, H)),
        "b_ih": u(ks[4], (3 * H,)),
        "b_hh": u(ks[5], (3 * H,)),
        "w_fc": u(ks[6], (NUM_CLASSES, H)),        # torch.nn.Linear layout
        "b_fc": u(ks[7], (NUM_CLASSES,)),
    }


# ---- pack base params into the fused kernel layout ----------------------------
def pack_params(p):
    table = p["embedding"]                                        # (V, H)
    fused_table = table @ p["w_enc"]                              # fold emb@w_enc
    b_enc = p["b_enc"].reshape(1, H)

    Wir, Wiz, Win = p["w_ih"][:H], p["w_ih"][H:2 * H], p["w_ih"][2 * H:]
    Whr, Whz, Whn = p["w_hh"][:H], p["w_hh"][H:2 * H], p["w_hh"][2 * H:]
    bir, biz, bin_ = p["b_ih"][:H], p["b_ih"][H:2 * H], p["b_ih"][2 * H:]
    bhr, bhz, bhn = p["b_hh"][:H], p["b_hh"][H:2 * H], p["b_hh"][2 * H:]

    # x @ W form (transpose torch's row-major gate blocks)
    WirT, WizT, WinT = Wir.T, Wiz.T, Win.T
    WhrT, WhzT, WhnT = Whr.T, Whz.T, Whn.T

    # steps t>=1: decoder_input == hidden, so gates = h @ W_gates + b_gates
    w_gates = jnp.concatenate([WirT + WhrT, WizT + WhzT, WinT, WhnT], axis=1)
    b_gates = jnp.concatenate([bir + bhr, biz + bhz, bin_, bhn]).reshape(1, 4 * H)

    # step 0: x = embedding(cls_token); its input gates are constants
    cls_emb = table[CLS_TOKEN_ID]                                 # (H,)
    gi0_r = cls_emb @ WirT + bir
    gi0_z = cls_emb @ WizT + biz
    gi0_n = cls_emb @ WinT + bin_
    w_step0 = jnp.concatenate(
        [WhrT, WhzT, jnp.zeros((H, H), jnp.float32), WhnT], axis=1)
    b_step0 = jnp.concatenate([gi0_r + bhr, gi0_z + bhz, gi0_n, bhn]).reshape(1, 4 * H)

    # fc head hoisted to one matmul: block-diagonal (T*H, T*C) + tiled bias
    w_fcT = p["w_fc"].T                                           # (H, C)
    w_fc_big = jnp.kron(jnp.eye(TARGET_LEN, dtype=jnp.float32), w_fcT)
    b_fc_big = jnp.tile(p["b_fc"], TARGET_LEN).reshape(1, TARGET_LEN * NUM_CLASSES)

    return {
        "fused_table": fused_table, "b_enc": b_enc,
        "w_step0": w_step0, "b_step0": b_step0,
        "w_gates": w_gates, "b_gates": b_gates,
        "w_fc_big": w_fc_big, "b_fc_big": b_fc_big,
    }


# ---- pure-JAX reference (unfused, torch-faithful math) -------------------------
def reference_forward(input_ids, attention_mask, p):
    del attention_mask
    hp = jax.lax.Precision.HIGHEST
    table = p["embedding"]
    emb = table[input_ids]                                        # (B, S, H)
    enc = jnp.tanh(jnp.einsum("bsh,hk->bsk", emb, p["w_enc"], precision=hp)
                   + p["b_enc"])
    h = enc[:, -1, :]
    x = jnp.broadcast_to(table[CLS_TOKEN_ID], (input_ids.shape[0], H))
    outs = []
    for _ in range(TARGET_LEN):
        gi = jnp.dot(x, p["w_ih"].T, precision=hp) + p["b_ih"]
        gh = jnp.dot(h, p["w_hh"].T, precision=hp) + p["b_hh"]
        r = jax.nn.sigmoid(gi[:, :H] + gh[:, :H])
        z = jax.nn.sigmoid(gi[:, H:2 * H] + gh[:, H:2 * H])
        n = jnp.tanh(gi[:, 2 * H:] + r * gh[:, 2 * H:])
        h = (1.0 - z) * n + z * h
        x = h
        outs.append(jnp.dot(h, p["w_fc"].T, precision=hp) + p["b_fc"])
    return jnp.stack(outs, axis=1)


if __name__ == "__main__":
    key = jax.random.PRNGKey(0)
    pkey, dkey = jax.random.split(key)
    base_params = init_params(pkey)
    kernel_params = pack_params(base_params)

    input_ids = jax.random.randint(dkey, (B, S), 0, VOCAB, dtype=jnp.int32)
    attention_mask = jnp.ones((B, S), jnp.float32)

    out = date_conversion_forward(input_ids, attention_mask, kernel_params)
    out = jax.block_until_ready(out)
    assert out.shape == (B, TARGET_LEN, NUM_CLASSES), out.shape
    assert bool(jnp.all(jnp.isfinite(out)))

    ref = reference_forward(input_ids, attention_mask, base_params)
    assert jnp.allclose(out, ref, atol=2e-3, rtol=2e-3), \
        float(jnp.max(jnp.abs(out - ref)))

    print("KERNEL_OK")
</pallas_src>

<mosaic_0001>
module attributes {stable_mosaic.version = 11 : i64} {
  func.func @fused_kernel(%arg0: memref<2x1xi32, #tpu.memory_space<vmem>>, %arg1: memref<64x32xf32, #tpu.memory_space<vmem>>, %arg2: memref<1x32xf32, #tpu.memory_space<vmem>>, %arg3: memref<32x128xf32, #tpu.memory_space<vmem>>, %arg4: memref<1x128xf32, #tpu.memory_space<vmem>>, %arg5: memref<32x128xf32, #tpu.memory_space<vmem>>, %arg6: memref<1x128xf32, #tpu.memory_space<vmem>>, %arg7: memref<256x128xf32, #tpu.memory_space<vmem>>, %arg8: memref<1x128xf32, #tpu.memory_space<vmem>>, %arg9: memref<2x128xf32, #tpu.memory_space<vmem>>) attributes {dimension_semantics = [], scalar_prefetch = 0 : i64, scratch_operands = 0 : i64, tpu.core_type = #tpu.core_type<tc>} {
    %c0 = arith.constant 0 : index
    %c0_0 = arith.constant 0 : index
    %0 = vector.load %arg0[%c0, %c0_0] : memref<2x1xi32, #tpu.memory_space<vmem>>, vector<2x1xi32>
    %1 = tpu.iota {dimensions = array<i32: 1>} : vector<2x64xi32>
    %2 = vector.broadcast %0 : vector<2x1xi32> to vector<2x64xi32>
    %3 = arith.cmpi eq, %1, %2 : vector<2x64xi32>
    %4 = arith.extui %3 : vector<2x64xi1> to vector<2x64xi32>
    %5 = arith.sitofp %4 : vector<2x64xi32> to vector<2x64xf32>
    %c0_1 = arith.constant 0 : index
    %c0_2 = arith.constant 0 : index
    %6 = vector.load %arg1[%c0_1, %c0_2] : memref<64x32xf32, #tpu.memory_space<vmem>>, vector<64x32xf32>
    %cst = arith.constant dense<0.000000e+00> : vector<2x32xf32>
    %7 = tpu.matmul %5, %6, %cst {dimension_numbers = #tpu.dot_dimension_numbers<[1], [0], [0], [1], [0, 0, 1, 1], [], []>} : vector<2x64xf32>, vector<64x32xf32>, vector<2x32xf32> -> vector<2x32xf32>
    %c0_3 = arith.constant 0 : index
    %c0_4 = arith.constant 0 : index
    %8 = vector.load %arg2[%c0_3, %c0_4] : memref<1x32xf32, #tpu.memory_space<vmem>>, vector<1x32xf32>
    %9 = vector.broadcast %8 : vector<1x32xf32> to vector<2x32xf32>
    %10 = arith.addf %7, %9 : vector<2x32xf32>
    %11 = math.tanh %10 : vector<2x32xf32>
    %c0_5 = arith.constant 0 : index
    %c0_6 = arith.constant 0 : index
    %12 = vector.load %arg3[%c0_5, %c0_6] : memref<32x128xf32, #tpu.memory_space<vmem>>, vector<32x128xf32>
    %c0_7 = arith.constant 0 : index
    %c0_8 = arith.constant 0 : index
    %13 = vector.load %arg4[%c0_7, %c0_8] : memref<1x128xf32, #tpu.memory_space<vmem>>, vector<1x128xf32>
    %c0_9 = arith.constant 0 : index
    %c0_10 = arith.constant 0 : index
    %14 = vector.load %arg5[%c0_9, %c0_10] : memref<32x128xf32, #tpu.memory_space<vmem>>, vector<32x128xf32>
    %c0_11 = arith.constant 0 : index
    %c0_12 = arith.constant 0 : index
    %15 = vector.load %arg6[%c0_11, %c0_12] : memref<1x128xf32, #tpu.memory_space<vmem>>, vector<1x128xf32>
    %cst_13 = arith.constant dense<0.000000e+00> : vector<2x128xf32>
    %16 = tpu.matmul %11, %12, %cst_13 {dimension_numbers = #tpu.dot_dimension_numbers<[1], [0], [0], [1], [0, 0, 1, 1], [], []>} : vector<2x32xf32>, vector<32x128xf32>, vector<2x128xf32> -> vector<2x128xf32>
    %17 = vector.broadcast %13 : vector<1x128xf32> to vector<2x128xf32>
    %18 = arith.addf %16, %17 : vector<2x128xf32>
    %19 = vector.extract_strided_slice %18 {offsets = [0, 0], sizes = [2, 32], strides = [1, 1]} : vector<2x128xf32> to vector<2x32xf32>
    %20 = arith.negf %19 : vector<2x32xf32>
    %21 = math.exp %20 : vector<2x32xf32>
    %cst_14 = arith.constant 1.000000e+00 : f32
    %22 = vector.broadcast %cst_14 : f32 to vector<2x32xf32>
    %23 = arith.addf %22, %21 : vector<2x32xf32>
    %24 = arith.divf %22, %23 : vector<2x32xf32>
    %25 = vector.extract_strided_slice %18 {offsets = [0, 32], sizes = [2, 32], strides = [1, 1]} : vector<2x128xf32> to vector<2x32xf32>
    %26 = arith.negf %25 : vector<2x32xf32>
    %27 = math.exp %26 : vector<2x32xf32>
    %cst_15 = arith.constant 1.000000e+00 : f32
    %28 = vector.broadcast %cst_15 : f32 to vector<2x32xf32>
    %29 = arith.addf %28, %27 : vector<2x32xf32>
    %30 = arith.divf %28, %29 : vector<2x32xf32>
    %31 = vector.extract_strided_slice %18 {offsets = [0, 64], sizes = [2, 32], strides = [1, 1]} : vector<2x128xf32> to vector<2x32xf32>
    %32 = vector.extract_strided_slice %18 {offsets = [0, 96], sizes = [2, 32], strides = [1, 1]} : vector<2x128xf32> to vector<2x32xf32>
    %33 = arith.mulf %24, %32 : vector<2x32xf32>
    %34 = arith.addf %31, %33 : vector<2x32xf32>
    %35 = math.tanh %34 : vector<2x32xf32>
    %cst_16 = arith.constant 1.000000e+00 : f32
    %36 = vector.broadcast %cst_16 : f32 to vector<2x32xf32>
    %37 = arith.subf %36, %30 : vector<2x32xf32>
    %38 = arith.mulf %37, %35 : vector<2x32xf32>
    %39 = arith.mulf %30, %11 : vector<2x32xf32>
    %40 = arith.addf %38, %39 : vector<2x32xf32>
    %cst_17 = arith.constant dense<0.000000e+00> : vector<2x128xf32>
    %41 = tpu.matmul %40, %14, %cst_17 {dimension_numbers = #tpu.dot_dimension_numbers<[1], [0], [0], [1], [0, 0, 1, 1], [], []>} : vector<2x32xf32>, vector<32x128xf32>, vector<2x128xf32> -> vector<2x128xf32>
    %42 = vector.broadcast %15 : vector<1x128xf32> to vector<2x128xf32>
    %43 = arith.addf %41, %42 : vector<2x128xf32>
    %44 = vector.extract_strided_slice %43 {offsets = [0, 0], sizes = [2, 32], strides = [1, 1]} : vector<2x128xf32> to vector<2x32xf32>
    %45 = arith.negf %44 : vector<2x32xf32>
    %46 = math.exp %45 : vector<2x32xf32>
    %cst_18 = arith.constant 1.000000e+00 : f32
    %47 = vector.broadcast %cst_18 : f32 to vector<2x32xf32>
    %48 = arith.addf %47, %46 : vector<2x32xf32>
    %49 = arith.divf %47, %48 : vector<2x32xf32>
    %50 = vector.extract_strided_slice %43 {offsets = [0, 32], sizes = [2, 32], strides = [1, 1]} : vector<2x128xf32> to vector<2x32xf32>
    %51 = arith.negf %50 : vector<2x32xf32>
    %52 = math.exp %51 : vector<2x32xf32>
    %cst_19 = arith.constant 1.000000e+00 : f32
    %53 = vector.broadcast %cst_19 : f32 to vector<2x32xf32>
    %54 = arith.addf %53, %52 : vector<2x32xf32>
    %55 = arith.divf %53, %54 : vector<2x32xf32>
    %56 = vector.extract_strided_slice %43 {offsets = [0, 64], sizes = [2, 32], strides = [1, 1]} : vector<2x128xf32> to vector<2x32xf32>
    %57 = vector.extract_strided_slice %43 {offsets = [0, 96], sizes = [2, 32], strides = [1, 1]} : vector<2x128xf32> to vector<2x32xf32>
    %58 = arith.mulf %49, %57 : vector<2x32xf32>
    %59 = arith.addf %56, %58 : vector<2x32xf32>
    %60 = math.tanh %59 : vector<2x32xf32>
    %cst_20 = arith.constant 1.000000e+00 : f32
    %61 = vector.broadcast %cst_20 : f32 to vector<2x32xf32>
    %62 = arith.subf %61, %55 : vector<2x32xf32>
    %63 = arith.mulf %62, %60 : vector<2x32xf32>
    %64 = arith.mulf %55, %40 : vector<2x32xf32>
    %65 = arith.addf %63, %64 : vector<2x32xf32>
    %cst_21 = arith.constant dense<0.000000e+00> : vector<2x128xf32>
    %66 = tpu.matmul %65, %14, %cst_21 {dimension_numbers = #tpu.dot_dimension_numbers<[1], [0], [0], [1], [0, 0, 1, 1], [], []>} : vector<2x32xf32>, vector<32x128xf32>, vector<2x128xf32> -> vector<2x128xf32>
    %67 = vector.broadcast %15 : vector<1x128xf32> to vector<2x128xf32>
    %68 = arith.addf %66, %67 : vector<2x128xf32>
    %69 = vector.extract_strided_slice %68 {offsets = [0, 0], sizes = [2, 32], strides = [1, 1]} : vector<2x128xf32> to vector<2x32xf32>
    %70 = arith.negf %69 : vector<2x32xf32>
    %71 = math.exp %70 : vector<2x32xf32>
    %cst_22 = arith.constant 1.000000e+00 : f32
    %72 = vector.broadcast %cst_22 : f32 to vector<2x32xf32>
    %73 = arith.addf %72, %71 : vector<2x32xf32>
    %74 = arith.divf %72, %73 : vector<2x32xf32>
    %75 = vector.extract_strided_slice %68 {offsets = [0, 32], sizes = [2, 32], strides = [1, 1]} : vector<2x128xf32> to vector<2x32xf32>
    %76 = arith.negf %75 : vector<2x32xf32>
    %77 = math.exp %76 : vector<2x32xf32>
    %cst_23 = arith.constant 1.000000e+00 : f32
    %78 = vector.broadcast %cst_23 : f32 to vector<2x32xf32>
    %79 = arith.addf %78, %77 : vector<2x32xf32>
    %80 = arith.divf %78, %79 : vector<2x32xf32>
    %81 = vector.extract_strided_slice %68 {offsets = [0, 64], sizes = [2, 32], strides = [1, 1]} : vector<2x128xf32> to vector<2x32xf32>
    %82 = vector.extract_strided_slice %68 {offsets = [0, 96], sizes = [2, 32], strides = [1, 1]} : vector<2x128xf32> to vector<2x32xf32>
    %83 = arith.mulf %74, %82 : vector<2x32xf32>
    %84 = arith.addf %81, %83 : vector<2x32xf32>
    %85 = math.tanh %84 : vector<2x32xf32>
    %cst_24 = arith.constant 1.000000e+00 : f32
    %86 = vector.broadcast %cst_24 : f32 to vector<2x32xf32>
    %87 = arith.subf %86, %80 : vector<2x32xf32>
    %88 = arith.mulf %87, %85 : vector<2x32xf32>
    %89 = arith.mulf %80, %65 : vector<2x32xf32>
    %90 = arith.addf %88, %89 : vector<2x32xf32>
    %cst_25 = arith.constant dense<0.000000e+00> : vector<2x128xf32>
    %91 = tpu.matmul %90, %14, %cst_25 {dimension_numbers = #tpu.dot_dimension_numbers<[1], [0], [0], [1], [0, 0, 1, 1], [], []>} : vector<2x32xf32>, vector<32x128xf32>, vector<2x128xf32> -> vector<2x128xf32>
    %92 = vector.broadcast %15 : vector<1x128xf32> to vector<2x128xf32>
    %93 = arith.addf %91, %92 : vector<2x128xf32>
    %94 = vector.extract_strided_slice %93 {offsets = [0, 0], sizes = [2, 32], strides = [1, 1]} : vector<2x128xf32> to vector<2x32xf32>
    %95 = arith.negf %94 : vector<2x32xf32>
    %96 = math.exp %95 : vector<2x32xf32>
    %cst_26 = arith.constant 1.000000e+00 : f32
    %97 = vector.broadcast %cst_26 : f32 to vector<2x32xf32>
    %98 = arith.addf %97, %96 : vector<2x32xf32>
    %99 = arith.divf %97, %98 : vector<2x32xf32>
    %100 = vector.extract_strided_slice %93 {offsets = [0, 32], sizes = [2, 32], strides = [1, 1]} : vector<2x128xf32> to vector<2x32xf32>
    %101 = arith.negf %100 : vector<2x32xf32>
    %102 = math.exp %101 : vector<2x32xf32>
    %cst_27 = arith.constant 1.000000e+00 : f32
    %103 = vector.broadcast %cst_27 : f32 to vector<2x32xf32>
    %104 = arith.addf %103, %102 : vector<2x32xf32>
    %105 = arith.divf %103, %104 : vector<2x32xf32>
    %106 = vector.extract_strided_slice %93 {offsets = [0, 64], sizes = [2, 32], strides = [1, 1]} : vector<2x128xf32> to vector<2x32xf32>
    %107 = vector.extract_strided_slice %93 {offsets = [0, 96], sizes = [2, 32], strides = [1, 1]} : vector<2x128xf32> to vector<2x32xf32>
    %108 = arith.mulf %99, %107 : vector<2x32xf32>
    %109 = arith.addf %106, %108 : vector<2x32xf32>
    %110 = math.tanh %109 : vector<2x32xf32>
    %cst_28 = arith.constant 1.000000e+00 : f32
    %111 = vector.broadcast %cst_28 : f32 to vector<2x32xf32>
    %112 = arith.subf %111, %105 : vector<2x32xf32>
    %113 = arith.mulf %112, %110 : vector<2x32xf32>
    %114 = arith.mulf %105, %90 : vector<2x32xf32>
    %115 = arith.addf %113, %114 : vector<2x32xf32>
    %cst_29 = arith.constant dense<0.000000e+00> : vector<2x128xf32>
    %116 = tpu.matmul %115, %14, %cst_29 {dimension_numbers = #tpu.dot_dimension_numbers<[1], [0], [0], [1], [0, 0, 1, 1], [], []>} : vector<2x32xf32>, vector<32x128xf32>, vector<2x128xf32> -> vector<2x128xf32>
    %117 = vector.broadcast %15 : vector<1x128xf32> to vector<2x128xf32>
    %118 = arith.addf %116, %117 : vector<2x128xf32>
    %119 = vector.extract_strided_slice %118 {offsets = [0, 0], sizes = [2, 32], strides = [1, 1]} : vector<2x128xf32> to vector<2x32xf32>
    %120 = arith.negf %119 : vector<2x32xf32>
    %121 = math.exp %120 : vector<2x32xf32>
    %cst_30 = arith.constant 1.000000e+00 : f32
    %122 = vector.broadcast %cst_30 : f32 to vector<2x32xf32>
    %123 = arith.addf %122, %121 : vector<2x32xf32>
    %124 = arith.divf %122, %123 : vector<2x32xf32>
    %125 = vector.extract_strided_slice %118 {offsets = [0, 32], sizes = [2, 32], strides = [1, 1]} : vector<2x128xf32> to vector<2x32xf32>
    %126 = arith.negf %125 : vector<2x32xf32>
    %127 = math.exp %126 : vector<2x32xf32>
    %cst_31 = arith.constant 1.000000e+00 : f32
    %128 = vector.broadcast %cst_31 : f32 to vector<2x32xf32>
    %129 = arith.addf %128, %127 : vector<2x32xf32>
    %130 = arith.divf %128, %129 : vector<2x32xf32>
    %131 = vector.extract_strided_slice %118 {offsets = [0, 64], sizes = [2, 32], strides = [1, 1]} : vector<2x128xf32> to vector<2x32xf32>
    %132 = vector.extract_strided_slice %118 {offsets = [0, 96], sizes = [2, 32], strides = [1, 1]} : vector<2x128xf32> to vector<2x32xf32>
    %133 = arith.mulf %124, %132 : vector<2x32xf32>
    %134 = arith.addf %131, %133 : vector<2x32xf32>
    %135 = math.tanh %134 : vector<2x32xf32>
    %cst_32 = arith.constant 1.000000e+00 : f32
    %136 = vector.broadcast %cst_32 : f32 to vector<2x32xf32>
    %137 = arith.subf %136, %130 : vector<2x32xf32>
    %138 = arith.mulf %137, %135 : vector<2x32xf32>
    %139 = arith.mulf %130, %115 : vector<2x32xf32>
    %140 = arith.addf %138, %139 : vector<2x32xf32>
    %cst_33 = arith.constant dense<0.000000e+00> : vector<2x128xf32>
    %141 = tpu.matmul %140, %14, %cst_33 {dimension_numbers = #tpu.dot_dimension_numbers<[1], [0], [0], [1], [0, 0, 1, 1], [], []>} : vector<2x32xf32>, vector<32x128xf32>, vector<2x128xf32> -> vector<2x128xf32>
    %142 = vector.broadcast %15 : vector<1x128xf32> to vector<2x128xf32>
    %143 = arith.addf %141, %142 : vector<2x128xf32>
    %144 = vector.extract_strided_slice %143 {offsets = [0, 0], sizes = [2, 32], strides = [1, 1]} : vector<2x128xf32> to vector<2x32xf32>
    %145 = arith.negf %144 : vector<2x32xf32>
    %146 = math.exp %145 : vector<2x32xf32>
    %cst_34 = arith.constant 1.000000e+00 : f32
    %147 = vector.broadcast %cst_34 : f32 to vector<2x32xf32>
    %148 = arith.addf %147, %146 : vector<2x32xf32>
    %149 = arith.divf %147, %148 : vector<2x32xf32>
    %150 = vector.extract_strided_slice %143 {offsets = [0, 32], sizes = [2, 32], strides = [1, 1]} : vector<2x128xf32> to vector<2x32xf32>
    %151 = arith.negf %150 : vector<2x32xf32>
    %152 = math.exp %151 : vector<2x32xf32>
    %cst_35 = arith.constant 1.000000e+00 : f32
    %153 = vector.broadcast %cst_35 : f32 to vector<2x32xf32>
    %154 = arith.addf %153, %152 : vector<2x32xf32>
    %155 = arith.divf %153, %154 : vector<2x32xf32>
    %156 = vector.extract_strided_slice %143 {offsets = [0, 64], sizes = [2, 32], strides = [1, 1]} : vector<2x128xf32> to vector<2x32xf32>
    %157 = vector.extract_strided_slice %143 {offsets = [0, 96], sizes = [2, 32], strides = [1, 1]} : vector<2x128xf32> to vector<2x32xf32>
    %158 = arith.mulf %149, %157 : vector<2x32xf32>
    %159 = arith.addf %156, %158 : vector<2x32xf32>
    %160 = math.tanh %159 : vector<2x32xf32>
    %cst_36 = arith.constant 1.000000e+00 : f32
    %161 = vector.broadcast %cst_36 : f32 to vector<2x32xf32>
    %162 = arith.subf %161, %155 : vector<2x32xf32>
    %163 = arith.mulf %162, %160 : vector<2x32xf32>
    %164 = arith.mulf %155, %140 : vector<2x32xf32>
    %165 = arith.addf %163, %164 : vector<2x32xf32>
    %cst_37 = arith.constant dense<0.000000e+00> : vector<2x128xf32>
    %166 = tpu.matmul %165, %14, %cst_37 {dimension_numbers = #tpu.dot_dimension_numbers<[1], [0], [0], [1], [0, 0, 1, 1], [], []>} : vector<2x32xf32>, vector<32x128xf32>, vector<2x128xf32> -> vector<2x128xf32>
    %167 = vector.broadcast %15 : vector<1x128xf32> to vector<2x128xf32>
    %168 = arith.addf %166, %167 : vector<2x128xf32>
    %169 = vector.extract_strided_slice %168 {offsets = [0, 0], sizes = [2, 32], strides = [1, 1]} : vector<2x128xf32> to vector<2x32xf32>
    %170 = arith.negf %169 : vector<2x32xf32>
    %171 = math.exp %170 : vector<2x32xf32>
    %cst_38 = arith.constant 1.000000e+00 : f32
    %172 = vector.broadcast %cst_38 : f32 to vector<2x32xf32>
    %173 = arith.addf %172, %171 : vector<2x32xf32>
    %174 = arith.divf %172, %173 : vector<2x32xf32>
    %175 = vector.extract_strided_slice %168 {offsets = [0, 32], sizes = [2, 32], strides = [1, 1]} : vector<2x128xf32> to vector<2x32xf32>
    %176 = arith.negf %175 : vector<2x32xf32>
    %177 = math.exp %176 : vector<2x32xf32>
    %cst_39 = arith.constant 1.000000e+00 : f32
    %178 = vector.broadcast %cst_39 : f32 to vector<2x32xf32>
    %179 = arith.addf %178, %177 : vector<2x32xf32>
    %180 = arith.divf %178, %179 : vector<2x32xf32>
    %181 = vector.extract_strided_slice %168 {offsets = [0, 64], sizes = [2, 32], strides = [1, 1]} : vector<2x128xf32> to vector<2x32xf32>
    %182 = vector.extract_strided_slice %168 {offsets = [0, 96], sizes = [2, 32], strides = [1, 1]} : vector<2x128xf32> to vector<2x32xf32>
    %183 = arith.mulf %174, %182 : vector<2x32xf32>
    %184 = arith.addf %181, %183 : vector<2x32xf32>
    %185 = math.tanh %184 : vector<2x32xf32>
    %cst_40 = arith.constant 1.000000e+00 : f32
    %186 = vector.broadcast %cst_40 : f32 to vector<2x32xf32>
    %187 = arith.subf %186, %180 : vector<2x32xf32>
    %188 = arith.mulf %187, %185 : vector<2x32xf32>
    %189 = arith.mulf %180, %165 : vector<2x32xf32>
    %190 = arith.addf %188, %189 : vector<2x32xf32>
    %cst_41 = arith.constant dense<0.000000e+00> : vector<2x128xf32>
    %191 = tpu.matmul %190, %14, %cst_41 {dimension_numbers = #tpu.dot_dimension_numbers<[1], [0], [0], [1], [0, 0, 1, 1], [], []>} : vector<2x32xf32>, vector<32x128xf32>, vector<2x128xf32> -> vector<2x128xf32>
    %192 = vector.broadcast %15 : vector<1x128xf32> to vector<2x128xf32>
    %193 = arith.addf %191, %192 : vector<2x128xf32>
    %194 = vector.extract_strided_slice %193 {offsets = [0, 0], sizes = [2, 32], strides = [1, 1]} : vector<2x128xf32> to vector<2x32xf32>
    %195 = arith.negf %194 : vector<2x32xf32>
    %196 = math.exp %195 : vector<2x32xf32>
    %cst_42 = arith.constant 1.000000e+00 : f32
    %197 = vector.broadcast %cst_42 : f32 to vector<2x32xf32>
    %198 = arith.addf %197, %196 : vector<2x32xf32>
    %199 = arith.divf %197, %198 : vector<2x32xf32>
    %200 = vector.extract_strided_slice %193 {offsets = [0, 32], sizes = [2, 32], strides = [1, 1]} : vector<2x128xf32> to vector<2x32xf32>
    %201 = arith.negf %200 : vector<2x32xf32>
    %202 = math.exp %201 : vector<2x32xf32>
    %cst_43 = arith.constant 1.000000e+00 : f32
    %203 = vector.broadcast %cst_43 : f32 to vector<2x32xf32>
    %204 = arith.addf %203, %202 : vector<2x32xf32>
    %205 = arith.divf %203, %204 : vector<2x32xf32>
    %206 = vector.extract_strided_slice %193 {offsets = [0, 64], sizes = [2, 32], strides = [1, 1]} : vector<2x128xf32> to vector<2x32xf32>
    %207 = vector.extract_strided_slice %193 {offsets = [0, 96], sizes = [2, 32], strides = [1, 1]} : vector<2x128xf32> to vector<2x32xf32>
    %208 = arith.mulf %199, %207 : vector<2x32xf32>
    %209 = arith.addf %206, %208 : vector<2x32xf32>
    %210 = math.tanh %209 : vector<2x32xf32>
    %cst_44 = arith.constant 1.000000e+00 : f32
    %211 = vector.broadcast %cst_44 : f32 to vector<2x32xf32>
    %212 = arith.subf %211, %205 : vector<2x32xf32>
    %213 = arith.mulf %212, %210 : vector<2x32xf32>
    %214 = arith.mulf %205, %190 : vector<2x32xf32>
    %215 = arith.addf %213, %214 : vector<2x32xf32>
    %216 = tpu.concatenate %40, %65, %90, %115, %140, %165, %190, %215 in 1 : vector<2x32xf32>, vector<2x32xf32>, vector<2x32xf32>, vector<2x32xf32>, vector<2x32xf32>, vector<2x32xf32>, vector<2x32xf32>, vector<2x32xf32> -> vector<2x256xf32>
    %c0_45 = arith.constant 0 : index
    %c0_46 = arith.constant 0 : index
    %217 = vector.load %arg7[%c0_45, %c0_46] : memref<256x128xf32, #tpu.memory_space<vmem>>, vector<256x128xf32>
    %cst_47 = arith.constant dense<0.000000e+00> : vector<2x128xf32>
    %218 = tpu.matmul %216, %217, %cst_47 {dimension_numbers = #tpu.dot_dimension_numbers<[1], [0], [0], [1], [0, 0, 1, 1], [], []>} : vector<2x256xf32>, vector<256x128xf32>, vector<2x128xf32> -> vector<2x128xf32>
    %c0_48 = arith.constant 0 : index
    %c0_49 = arith.constant 0 : index
    %219 = vector.load %arg8[%c0_48, %c0_49] : memref<1x128xf32, #tpu.memory_space<vmem>>, vector<1x128xf32>
    %220 = vector.broadcast %219 : vector<1x128xf32> to vector<2x128xf32>
    %221 = arith.addf %218, %220 : vector<2x128xf32>
    %c0_50 = arith.constant 0 : index
    %c0_51 = arith.constant 0 : index
    %222 = vector.load %arg9[%c0_50, %c0_51] : memref<2x128xf32, #tpu.memory_space<vmem>>, vector<2x128xf32>
    tpu.vector_store %arg9[%c0_50, %c0_51], %221 {strides = array<i32>} : memref<2x128xf32, #tpu.memory_space<vmem>>, vector<2x128xf32>,
    return
  }
}

</mosaic_0001>

<llo_original>
// kernel: date_conversion_forward.1
$region0: #{date_conversion_forward.1}
  #allocation0 [shape = 'u32[]', space=smem, size = 0x4, offset = 0x4, fixed_abs, tag = 'smem constant byte address 0x4 - core index']
  #allocation1 [shape = 'u32[144,128]{1,0:T(1,128)}', space=vmem, size = 0x12000, scoped, tag = 'internal scratch']
  %s0 = inlined_call_operand.vmem [shape: s32[2,1], index: 0, kind: input, shape index: {}]
  %s1 = inlined_call_operand.vmem [shape: f32[64,32], index: 1, kind: input, shape index: {}]
  %s2 = inlined_call_operand.vmem [shape: f32[1,32], index: 2, kind: input, shape index: {}]
  %s3 = inlined_call_operand.vmem [shape: f32[32,128], index: 3, kind: input, shape index: {}]
  %s4 = inlined_call_operand.vmem [shape: f32[1,128], index: 4, kind: input, shape index: {}]
  %s5 = inlined_call_operand.vmem [shape: f32[32,128], index: 5, kind: input, shape index: {}]
  %s6 = inlined_call_operand.vmem [shape: f32[1,128], index: 6, kind: input, shape index: {}]
  %s7 = inlined_call_operand.hbm [shape: f32[256,128], index: 7, kind: input, shape index: {}]
  %s8 = inlined_call_operand.vmem [shape: f32[1,128], index: 8, kind: input, shape index: {}]
  %s9 = inlined_call_operand.vmem [shape: f32[2,128], index: 9, kind: output, shape index: {}]
  %s10 = sld [smem:[#allocation0]]
  $region50: #{date_conversion_forward.1} parent=0
    _
  %s12 = ssub.s32 1, %s10
  %s13 = scalar_select 0, %s12, %s10
  $region1: #{date_conversion_forward.1} parent=0
    #allocation2 [shape = 'u8[131072]{0}', space=vmem, size = 0x20000, scoped, tag = 'input window, operand 7, single buffered']
    #allocation3 [shape = 's32[1]{0}', space=sflag, size = 0x4, scoped, tag = 'scoped memory for date_conversion_forward.1']
    %14 = vsyncpa [#allocation3], 0
    // Predicated region
    $region2: #{date_conversion_forward.1} parent=1 // pred_check
      _
    $region3: #{date_conversion_forward.1} parent=1 // pred_check_branch
      %16 = sbr.rel (0) target = $region5
    $region4: #{date_conversion_forward.1} parent=1 // pred_region
      _
    $region5: #{date_conversion_forward.1} parent=1 // pred_fallthru
      _
    // Predicated region
    $region6: #{date_conversion_forward.1} parent=1 // pred_check
      _
    $region7: #{date_conversion_forward.1} parent=1 // pred_check_branch
      %18 = sbr.rel (0) target = $region9
    $region8: #{date_conversion_forward.1} parent=1 // pred_region
      _
    $region9: #{date_conversion_forward.1} parent=1 // pred_fallthru
      _
    // Predicated region
    $region10: #{date_conversion_forward.1} parent=1 // pred_check
      _
    $region11: #{date_conversion_forward.1} parent=1 // pred_check_branch
      %20 = sbr.rel (0) target = $region13
    $region12: #{date_conversion_forward.1} parent=1 // pred_region
      _
    $region13: #{date_conversion_forward.1} parent=1 // pred_fallthru
      _
    // Predicated region
    $region14: #{date_conversion_forward.1} parent=1 // pred_check
      _
    $region15: #{date_conversion_forward.1} parent=1 // pred_check_branch
      %22 = sbr.rel (0) target = $region17
    $region16: #{date_conversion_forward.1} parent=1 // pred_region
      _
    $region17: #{date_conversion_forward.1} parent=1 // pred_fallthru
      _
    // Predicated region
    $region18: #{date_conversion_forward.1} parent=1 // pred_check
      _
    $region19: #{date_conversion_forward.1} parent=1 // pred_check_branch
      %24 = sbr.rel (0) target = $region21
    $region20: #{date_conversion_forward.1} parent=1 // pred_region
      _
    $region21: #{date_conversion_forward.1} parent=1 // pred_fallthru
      _
    // Predicated region
    $region22: #{date_conversion_forward.1} parent=1 // pred_check
      _
    $region23: #{date_conversion_forward.1} parent=1 // pred_check_branch
      %26 = sbr.rel (0) target = $region25
    $region24: #{date_conversion_forward.1} parent=1 // pred_region
      _
    $region25: #{date_conversion_forward.1} parent=1 // pred_fallthru
      _
    // Predicated region
    $region26: #{date_conversion_forward.1} parent=1 // pred_check
      _
    $region27: #{date_conversion_forward.1} parent=1 // pred_check_branch
      %28 = sbr.rel (0) target = $region29
    $region28: #{date_conversion_forward.1} parent=1 // pred_region
      _
    $region29: #{date_conversion_forward.1} parent=1 // pred_fallthru
      _
    // Predicated region
    $region30: #{date_conversion_forward.1} parent=1 // pred_check
      _
    $region31: #{date_conversion_forward.1} parent=1 // pred_check_branch
      %30 = sbr.rel (0) target = $region33
    $region32: #{date_conversion_forward.1} parent=1 // pred_region
      %s32 = ssub.s32 4096, 4096
      %33 = vsyncadd [#allocation3], %s32
      %s34 = sshll.u32 [#allocation2], 4
      %s35 = int_to_ptr.vmem [resolvable:$true] %s34
      %40 = dma.hbm_to_vmem [thread:$0]  %s7, 4096, %s35, [#allocation3], 128, 128, 8
    $region33: #{date_conversion_forward.1} parent=1 // pred_fallthru
      _
    // Predicated region
    $region34: #{date_conversion_forward.1} parent=1 // pred_check
      _
    $region35: #{date_conversion_forward.1} parent=1 // pred_check_branch
      %42 = sbr.rel (0) target = $region37
    $region36: #{date_conversion_forward.1} parent=1 // pred_region
      _
    $region37: #{date_conversion_forward.1} parent=1 // pred_fallthru
      _
    // Predicated region
    $region38: #{date_conversion_forward.1} parent=1 // pred_check
      _
    $region39: #{date_conversion_forward.1} parent=1 // pred_check_branch
      %44 = sbr.rel (0) target = $region41
    $region40: #{date_conversion_forward.1} parent=1 // pred_region
      %45 = dma.done [#allocation3], 4096
    $region41: #{date_conversion_forward.1} parent=1 // pred_fallthru
      _
    %v46 = vld [vmem:[%s0] sm:$0x3]
    %v47 = vlaneseq
    %v48 = vand.u32 %v47, 127
    %49 = vset.pattern.permute.xlu0 0
    %50 = vperm.xlu0 %49, %v46
    %v51 = vpop.permute.xlu0 %50
    %vm52 = vcmp.eq.s32.totalorder %v48, %v51
    %v53 = vsel %vm52, 1, 0
    %v54 = vcvt.s32.f32 %v53
    %v55 = vld [vmem:[%s1] sm:$0xff]
    %v56 = vld [vmem:[%s1 + $0x8] sm:$0xff]
    %v57 = vld [vmem:[%s1 + $0x10] sm:$0xff]
    %v58 = vld [vmem:[%s1 + $0x18] sm:$0xff]
    %v59 = vld [vmem:[%s1 + $0x20] sm:$0xff]
    %v60 = vld [vmem:[%s1 + $0x28] sm:$0xff]
    %v61 = vld [vmem:[%s1 + $0x30] sm:$0xff]
    %v62 = vld [vmem:[%s1 + $0x38] sm:$0xff]
    %v63 = vld [vmem:[%s2] sm:$0x1]
    %v65 = vlaneseq
    %v66 = vshrl.u32 %v65, 7
    %v67 = vsub.s32 0, %v66
    %v68 = vrot.slane %v63, %v67
    %vm70 = vcmask 523264
    %v72 = vsel %vm70, %v54, 0
    %74 = vmatprep.subr.mxu0 0.0
    %75 = vmatpush1.msra.mxu0 0.0
    %76 = vmatprep.subr.mxu0 0.0
    %77 = vmatpush1.msra.mxu0 0.0
    %78 = vmatprep.subr.mxu0 0.0
    %79 = vmatpush1.msra.mxu0 0.0
    %80 = vmatprep.subr.mxu0 0.0
    %81 = vmatpush1.msra.mxu0 0.0
    %82 = vmatprep.subr.mxu0 0.0
    %83 = vmatpush1.msra.mxu0 0.0
    %84 = vmatprep.subr.mxu0 0.0
    %85 = vmatpush1.msra.mxu0 0.0
    %86 = vmatprep.subr.mxu0 0.0
    %87 = vmatpush1.msra.mxu0 0.0
    %88 = vmatprep.subr.mxu0 0.0
    %89 = vmatpush1.msra.mxu0 0.0
    %90 = vmatprep.subr.mxu0 0.0
    %91 = vmatpush1.msra.mxu0 %v62
    %92 = vmatprep.subr.mxu0 0.0
    %93 = vmatpush1.msra.mxu0 %v61
    %94 = vmatprep.subr.mxu0 0.0
    %95 = vmatpush1.msra.mxu0 %v60
    %96 = vmatprep.subr.mxu0 0.0
    %97 = vmatpush1.msra.mxu0 %v59
    %98 = vmatprep.subr.mxu0 0.0
    %99 = vmatpush1.msra.mxu0 %v58
    %100 = vmatprep.subr.mxu0 0.0
    %101 = vmatpush1.msra.mxu0 %v57
    %102 = vmatprep.subr.mxu0 0.0
    %103 = vmatpush1.msra.mxu0 %v56
    %104 = vmatprep.subr.mxu0 0.0
    %105 = vmatpush1.msra.mxu0 %v55
    %106 = vmatprep.subr.mxu0 0.0
    %107 = vmatpush2.msra.mxu0 0.0
    %108 = vmatprep.subr.mxu0 0.0
    %109 = vmatpush2.msra.mxu0 0.0
    %110 = vmatprep.subr.mxu0 0.0
    %111 = vmatpush2.msra.mxu0 0.0
    %112 = vmatprep.subr.mxu0 0.0
    %113 = vmatpush2.msra.mxu0 0.0
    %114 = vmatprep.subr.mxu0 0.0
    %115 = vmatpush2.msra.mxu0 0.0
    %116 = vmatprep.subr.mxu0 0.0
    %117 = vmatpush2.msra.mxu0 0.0
    %118 = vmatprep.subr.mxu0 0.0
    %119 = vmatpush2.msra.mxu0 0.0
    %120 = vmatprep.subr.mxu0 0.0
    %121 = vmatpush2.msra.mxu0 0.0
    %122 = vmatprep.subr.mxu0 0.0
    %123 = vmatpush2.msra.mxu0 0.0
    %124 = vmatprep.subr.mxu0 0.0
    %125 = vmatpush2.msra.mxu0 0.0
    %126 = vmatprep.subr.mxu0 0.0
    %127 = vmatpush2.msra.mxu0 0.0
    %128 = vmatprep.subr.mxu0 0.0
    %129 = vmatpush2.msra.mxu0 0.0
    %130 = vmatprep.subr.mxu0 0.0
    %131 = vmatpush2.msra.mxu0 0.0
    %132 = vmatprep.subr.mxu0 0.0
    %133 = vmatpush2.msra.mxu0 0.0
    %134 = vmatprep.subr.mxu0 0.0
    %135 = vmatpush2.msra.mxu0 0.0
    %136 = vmatprep.subr.mxu0 0.0
    %137 = vmatpush2.msra.mxu0 0.0
    %138 = vmatprep.mubr.f32.mxu0 0.0
    %139 = vmatmul.mubr.f32.gmra.mxu0 %v72
    %v140 = vpop.f32.mrf.mxu0
    %v141 = vadd.f32 %v68, %v140
    %v142 = vpop.f32.mrf.mxu0
    %143 = vdwg.mxu0
    %v144 = vtanh.pop %v141
    %v145 = vld [vmem:[%s3] sm:$0xff]
    %v146 = vld [vmem:[%s3 + $0x8] sm:$0xff]
    %v147 = vld [vmem:[%s3 + $0x10] sm:$0xff]
    %v148 = vld [vmem:[%s3 + $0x18] sm:$0xff]
    %v149 = vld [vmem:[%s4] sm:$0x1]
    %v150 = vld [vmem:[%s5] sm:$0xff]
    %v151 = vld [vmem:[%s5 + $0x8] sm:$0xff]
    %v152 = vld [vmem:[%s5 + $0x10] sm:$0xff]
    %v153 = vld [vmem:[%s5 + $0x18] sm:$0xff]
    %v154 = vld [vmem:[%s6] sm:$0x1]
    %v156 = vlaneseq
    %v157 = vshrl.u32 %v156, 7
    %v158 = vsub.s32 0, %v157
    %v159 = vrot.slane %v149, %v158
    %vm161 = vcmask 261120
    %v163 = vsel %vm161, %v144, 0
    %165 = vmatprep.subr.mxu0 0.0
    %166 = vmatpush1.msra.mxu0 0.0
    %167 = vmatprep.subr.mxu0 0.0
    %168 = vmatpush1.msra.mxu0 0.0
    %169 = vmatprep.subr.mxu0 0.0
    %170 = vmatpush1.msra.mxu0 0.0
    %171 = vmatprep.subr.mxu0 0.0
    %172 = vmatpush1.msra.mxu0 0.0
    %173 = vmatprep.subr.mxu0 0.0
    %174 = vmatpush1.msra.mxu0 0.0
    %175 = vmatprep.subr.mxu0 0.0
    %176 = vmatpush1.msra.mxu0 0.0
    %177 = vmatprep.subr.mxu0 0.0
    %178 = vmatpush1.msra.mxu0 0.0
    %179 = vmatprep.subr.mxu0 0.0
    %180 = vmatpush1.msra.mxu0 0.0
    %181 = vmatprep.subr.mxu0 0.0
    %182 = vmatpush1.msra.mxu0 0.0
    %183 = vmatprep.subr.mxu0 0.0
    %184 = vmatpush1.msra.mxu0 0.0
    %185 = vmatprep.subr.mxu0 0.0
    %186 = vmatpush1.msra.mxu0 0.0
    %187 = vmatprep.subr.mxu0 0.0
    %188 = vmatpush1.msra.mxu0 0.0
    %189 = vmatprep.subr.mxu0 0.0
    %190 = vmatpush1.msra.mxu0 %v148
    %191 = vmatprep.subr.mxu0 0.0
    %192 = vmatpush1.msra.mxu0 %v147
    %193 = vmatprep.subr.mxu0 0.0
    %194 = vmatpush1.msra.mxu0 %v146
    %195 = vmatprep.subr.mxu0 0.0
    %196 = vmatpush1.msra.mxu0 %v145
    %197 = vmatprep.subr.mxu0 0.0
    %198 = vmatpush2.msra.mxu0 0.0
    %199 = vmatprep.subr.mxu0 0.0
    %200 = vmatpush2.msra.mxu0 0.0
    %201 = vmatprep.subr.mxu0 0.0
    %202 = vmatpush2.msra.mxu0 0.0
    %203 = vmatprep.subr.mxu0 0.0
    %204 = vmatpush2.msra.mxu0 0.0
    %205 = vmatprep.subr.mxu0 0.0
    %206 = vmatpush2.msra.mxu0 0.0
    %207 = vmatprep.subr.mxu0 0.0
    %208 = vmatpush2.msra.mxu0 0.0
    %209 = vmatprep.subr.mxu0 0.0
    %210 = vmatpush2.msra.mxu0 0.0
    %211 = vmatprep.subr.mxu0 0.0
    %212 = vmatpush2.msra.mxu0 0.0
    %213 = vmatprep.subr.mxu0 0.0
    %214 = vmatpush2.msra.mxu0 0.0
    %215 = vmatprep.subr.mxu0 0.0
    %216 = vmatpush2.msra.mxu0 0.0
    %217 = vmatprep.subr.mxu0 0.0
    %218 = vmatpush2.msra.mxu0 0.0
    %219 = vmatprep.subr.mxu0 0.0
    %220 = vmatpush2.msra.mxu0 0.0
    %221 = vmatprep.subr.mxu0 0.0
    %222 = vmatpush2.msra.mxu0 0.0
    %223 = vmatprep.subr.mxu0 0.0
    %224 = vmatpush2.msra.mxu0 0.0
    %225 = vmatprep.subr.mxu0 0.0
    %226 = vmatpush2.msra.mxu0 0.0
    %227 = vmatprep.subr.mxu0 0.0
    %228 = vmatpush2.msra.mxu0 0.0
    %229 = vmatprep.mubr.f32.mxu0 0.0
    %230 = vmatmul.mubr.f32.gmra.mxu0 %v163
    %v231 = vpop.f32.mrf.mxu0
    %v232 = vadd.f32 %v159, %v231
    %v233 = vpop.f32.mrf.mxu0
    %234 = vdwg.mxu0
    %v235 = vxor.u32 %v232, 2147483648
    %v236 = vmul.f32 %v235, 1.442695
    %v237 = vpow.pop %v236
    %v238 = vadd.f32 %v237, 1.0
    %v239 = vrcp.pop %v238
    %v240 = vmul.f32 1.0, %v239
    %242 = vrot.lane.b32.xlu0 %v232, 32
    %v243 = vpop.permute.xlu0 %242
    %v245 = vmul.f32 %v240, %v243
    %247 = vrot.lane.b32.xlu0 %v245, 64
    %v248 = vpop.permute.xlu0 %247
    %v250 = vadd.f32 %v232, %v248
    %v251 = vtanh.pop %v250
    %v252 = vsub.f32 1.0, %v240
    %254 = vrot.lane.b32.xlu0 %v251, 96
    %v255 = vpop.permute.xlu0 %254
    %v257 = vmul.f32 %v252, %v255
    %258 = vrot.lane.b32.xlu0 %v144, 32
    %v259 = vpop.permute.xlu0 %258
    %v261 = vmul.f32 %v240, %v259
    %v262 = vadd.f32 %v257, %v261
    %v264 = vlaneseq
    %v265 = vshrl.u32 %v264, 7
    %v266 = vsub.s32 0, %v265
    %v267 = vrot.slane %v154, %v266
    %270 = vrot.lane.b32.xlu0 %v262, 96
    %v271 = vpop.permute.xlu0 %270
    %v272 = vsel %vm161, %v271, 0
    %274 = vmatprep.subr.mxu0 0.0
    %275 = vmatpush1.msra.mxu0 0.0
    %276 = vmatprep.subr.mxu0 0.0
    %277 = vmatpush1.msra.mxu0 0.0
    %278 = vmatprep.subr.mxu0 0.0
    %279 = vmatpush1.msra.mxu0 0.0
    %280 = vmatprep.subr.mxu0 0.0
    %281 = vmatpush1.msra.mxu0 0.0
    %282 = vmatprep.subr.mxu0 0.0
    %283 = vmatpush1.msra.mxu0 0.0
    %284 = vmatprep.subr.mxu0 0.0
    %285 = vmatpush1.msra.mxu0 0.0
    %286 = vmatprep.subr.mxu0 0.0
    %287 = vmatpush1.msra.mxu0 0.0
    %288 = vmatprep.subr.mxu0 0.0
    %289 = vmatpush1.msra.mxu0 0.0
    %290 = vmatprep.subr.mxu0 0.0
    %291 = vmatpush1.msra.mxu0 0.0
    %292 = vmatprep.subr.mxu0 0.0
    %293 = vmatpush1.msra.mxu0 0.0
    %294 = vmatprep.subr.mxu0 0.0
    %295 = vmatpush1.msra.mxu0 0.0
    %296 = vmatprep.subr.mxu0 0.0
    %297 = vmatpush1.msra.mxu0 0.0
    %298 = vmatprep.subr.mxu0 0.0
    %299 = vmatpush1.msra.mxu0 %v153
    %300 = vmatprep.subr.mxu0 0.0
    %301 = vmatpush1.msra.mxu0 %v152
    %302 = vmatprep.subr.mxu0 0.0
    %303 = vmatpush1.msra.mxu0 %v151
    %304 = vmatprep.subr.mxu0 0.0
    %305 = vmatpush1.msra.mxu0 %v150
    %306 = vmatprep.subr.mxu0 0.0
    %307 = vmatpush2.msra.mxu0 0.0
    %308 = vmatprep.subr.mxu0 0.0
    %309 = vmatpush2.msra.mxu0 0.0
    %310 = vmatprep.subr.mxu0 0.0
    %311 = vmatpush2.msra.mxu0 0.0
    %312 = vmatprep.subr.mxu0 0.0
    %313 = vmatpush2.msra.mxu0 0.0
    %314 = vmatprep.subr.mxu0 0.0
    %315 = vmatpush2.msra.mxu0 0.0
    %316 = vmatprep.subr.mxu0 0.0
    %317 = vmatpush2.msra.mxu0 0.0
    %318 = vmatprep.subr.mxu0 0.0
    %319 = vmatpush2.msra.mxu0 0.0
    %320 = vmatprep.subr.mxu0 0.0
    %321 = vmatpush2.msra.mxu0 0.0
    %322 = vmatprep.subr.mxu0 0.0
    %323 = vmatpush2.msra.mxu0 0.0
    %324 = vmatprep.subr.mxu0 0.0
    %325 = vmatpush2.msra.mxu0 0.0
    %326 = vmatprep.subr.mxu0 0.0
    %327 = vmatpush2.msra.mxu0 0.0
    %328 = vmatprep.subr.mxu0 0.0
    %329 = vmatpush2.msra.mxu0 0.0
    %330 = vmatprep.subr.mxu0 0.0
    %331 = vmatpush2.msra.mxu0 0.0
    %332 = vmatprep.subr.mxu0 0.0
    %333 = vmatpush2.msra.mxu0 0.0
    %334 = vmatprep.subr.mxu0 0.0
    %335 = vmatpush2.msra.mxu0 0.0
    %336 = vmatprep.subr.mxu0 0.0
    %337 = vmatpush2.msra.mxu0 0.0
    %338 = vmatprep.mubr.f32.mxu0 0.0
    %339 = vmatmul.mubr.f32.gmra.mxu0 %v272
    %v340 = vpop.f32.mrf.mxu0
    %v341 = vadd.f32 %v267, %v340
    %v342 = vpop.f32.mrf.mxu0
    %343 = vdwg.mxu0
    %v344 = vxor.u32 %v341, 2147483648
    %v345 = vmul.f32 %v344, 1.442695
    %v346 = vpow.pop %v345
    %v347 = vadd.f32 %v346, 1.0
    %v348 = vrcp.pop %v347
    %v349 = vmul.f32 1.0, %v348
    %351 = vrot.lane.b32.xlu0 %v341, 32
    %v352 = vpop.permute.xlu0 %351
    %v354 = vmul.f32 %v349, %v352
    %356 = vrot.lane.b32.xlu0 %v354, 64
    %v357 = vpop.permute.xlu0 %356
    %v359 = vadd.f32 %v341, %v357
    %v360 = vtanh.pop %v359
    %v361 = vsub.f32 1.0, %v349
    %363 = vrot.lane.b32.xlu0 %v360, 96
    %v364 = vpop.permute.xlu0 %363
    %v366 = vmul.f32 %v361, %v364
    %v367 = vmul.f32 %v349, %v262
    %v368 = vadd.f32 %v366, %v367
    %370 = vrot.lane.b32.xlu0 %v368, 96
    %v371 = vpop.permute.xlu0 %370
    %v372 = vsel %vm161, %v371, 0
    %374 = vmatprep.subr.mxu0 0.0
    %375 = vmatpush1.msra.mxu0 0.0
    %376 = vmatprep.subr.mxu0 0.0
    %377 = vmatpush1.msra.mxu0 0.0
    %378 = vmatprep.subr.mxu0 0.0
    %379 = vmatpush1.msra.mxu0 0.0
    %380 = vmatprep.subr.mxu0 0.0
    %381 = vmatpush1.msra.mxu0 0.0
    %382 = vmatprep.subr.mxu0 0.0
    %383 = vmatpush1.msra.mxu0 0.0
    %384 = vmatprep.subr.mxu0 0.0
    %385 = vmatpush1.msra.mxu0 0.0
    %386 = vmatprep.subr.mxu0 0.0
    %387 = vmatpush1.msra.mxu0 0.0
    %388 = vmatprep.subr.mxu0 0.0
    %389 = vmatpush1.msra.mxu0 0.0
    %390 = vmatprep.subr.mxu0 0.0
    %391 = vmatpush1.msra.mxu0 0.0
    %392 = vmatprep.subr.mxu0 0.0
    %393 = vmatpush1.msra.mxu0 0.0
    %394 = vmatprep.subr.mxu0 0.0
    %395 = vmatpush1.msra.mxu0 0.0
    %396 = vmatprep.subr.mxu0 0.0
    %397 = vmatpush1.msra.mxu0 0.0
    %398 = vmatprep.subr.mxu0 0.0
    %399 = vmatpush1.msra.mxu0 %v153
    %400 = vmatprep.subr.mxu0 0.0
    %401 = vmatpush1.msra.mxu0 %v152
    %402 = vmatprep.subr.mxu0 0.0
    %403 = vmatpush1.msra.mxu0 %v151
    %404 = vmatprep.subr.mxu0 0.0
    %405 = vmatpush1.msra.mxu0 %v150
    %406 = vmatprep.subr.mxu0 0.0
    %407 = vmatpush2.msra.mxu0 0.0
    %408 = vmatprep.subr.mxu0 0.0
    %409 = vmatpush2.msra.mxu0 0.0
    %410 = vmatprep.subr.mxu0 0.0
    %411 = vmatpush2.msra.mxu0 0.0
    %412 = vmatprep.subr.mxu0 0.0
    %413 = vmatpush2.msra.mxu0 0.0
    %414 = vmatprep.subr.mxu0 0.0
    %415 = vmatpush2.msra.mxu0 0.0
    %416 = vmatprep.subr.mxu0 0.0
    %417 = vmatpush2.msra.mxu0 0.0
    %418 = vmatprep.subr.mxu0 0.0
    %419 = vmatpush2.msra.mxu0 0.0
    %420 = vmatprep.subr.mxu0 0.0
    %421 = vmatpush2.msra.mxu0 0.0
    %422 = vmatprep.subr.mxu0 0.0
    %423 = vmatpush2.msra.mxu0 0.0
    %424 = vmatprep.subr.mxu0 0.0
    %425 = vmatpush2.msra.mxu0 0.0
    %426 = vmatprep.subr.mxu0 0.0
    %427 = vmatpush2.msra.mxu0 0.0
    %428 = vmatprep.subr.mxu0 0.0
    %429 = vmatpush2.msra.mxu0 0.0
    %430 = vmatprep.subr.mxu0 0.0
    %431 = vmatpush2.msra.mxu0 0.0
    %432 = vmatprep.subr.mxu0 0.0
    %433 = vmatpush2.msra.mxu0 0.0
    %434 = vmatprep.subr.mxu0 0.0
    %435 = vmatpush2.msra.mxu0 0.0
    %436 = vmatprep.subr.mxu0 0.0
    %437 = vmatpush2.msra.mxu0 0.0
    %438 = vmatprep.mubr.f32.mxu0 0.0
    %439 = vmatmul.mubr.f32.gmra.mxu0 %v372
    %v440 = vpop.f32.mrf.mxu0
    %v441 = vadd.f32 %v267, %v440
    %v442 = vpop.f32.mrf.mxu0
    %443 = vdwg.mxu0
    %v444 = vxor.u32 %v441, 2147483648
    %v445 = vmul.f32 %v444, 1.442695
    %v446 = vpow.pop %v445
    %v447 = vadd.f32 %v446, 1.0
    %v448 = vrcp.pop %v447
    %v449 = vmul.f32 1.0, %v448
    %451 = vrot.lane.b32.xlu0 %v441, 32
    %v452 = vpop.permute.xlu0 %451
    %v454 = vmul.f32 %v449, %v452
    %456 = vrot.lane.b32.xlu0 %v454, 64
    %v457 = vpop.permute.xlu0 %456
    %v459 = vadd.f32 %v441, %v457
    %v460 = vtanh.pop %v459
    %v461 = vsub.f32 1.0, %v449
    %463 = vrot.lane.b32.xlu0 %v460, 96
    %v464 = vpop.permute.xlu0 %463
    %v466 = vmul.f32 %v461, %v464
    %v467 = vmul.f32 %v449, %v368
    %v468 = vadd.f32 %v466, %v467
    %470 = vrot.lane.b32.xlu0 %v468, 96
    %v471 = vpop.permute.xlu0 %470
    %v472 = vsel %vm161, %v471, 0
    %474 = vmatprep.subr.mxu0 0.0
    %475 = vmatpush1.msra.mxu0 0.0
    %476 = vmatprep.subr.mxu0 0.0
    %477 = vmatpush1.msra.mxu0 0.0
    %478 = vmatprep.subr.mxu0 0.0
    %479 = vmatpush1.msra.mxu0 0.0
    %480 = vmatprep.subr.mxu0 0.0
    %481 = vmatpush1.msra.mxu0 0.0
    %482 = vmatprep.subr.mxu0 0.0
    %483 = vmatpush1.msra.mxu0 0.0
    %484 = vmatprep.subr.mxu0 0.0
    %485 = vmatpush1.msra.mxu0 0.0
    %486 = vmatprep.subr.mxu0 0.0
    %487 = vmatpush1.msra.mxu0 0.0
    %488 = vmatprep.subr.mxu0 0.0
    %489 = vmatpush1.msra.mxu0 0.0
    %490 = vmatprep.subr.mxu0 0.0
    %491 = vmatpush1.msra.mxu0 0.0
    %492 = vmatprep.subr.mxu0 0.0
    %493 = vmatpush1.msra.mxu0 0.0
    %494 = vmatprep.subr.mxu0 0.0
    %495 = vmatpush1.msra.mxu0 0.0
    %496 = vmatprep.subr.mxu0 0.0
    %497 = vmatpush1.msra.mxu0 0.0
    %498 = vmatprep.subr.mxu0 0.0
    %499 = vmatpush1.msra.mxu0 %v153
    %500 = vmatprep.subr.mxu0 0.0
    %501 = vmatpush1.msra.mxu0 %v152
    %502 = vmatprep.subr.mxu0 0.0
    %503 = vmatpush1.msra.mxu0 %v151
    %504 = vmatprep.subr.mxu0 0.0
    %505 = vmatpush1.msra.mxu0 %v150
    %506 = vmatprep.subr.mxu0 0.0
    %507 = vmatpush2.msra.mxu0 0.0
    %508 = vmatprep.subr.mxu0 0.0
    %509 = vmatpush2.msra.mxu0 0.0
    %510 = vmatprep.subr.mxu0 0.0
    %511 = vmatpush2.msra.mxu0 0.0
    %512 = vmatprep.subr.mxu0 0.0
    %513 = vmatpush2.msra.mxu0 0.0
    %514 = vmatprep.subr.mxu0 0.0
    %515 = vmatpush2.msra.mxu0 0.0
    %516 = vmatprep.subr.mxu0 0.0
    %517 = vmatpush2.msra.mxu0 0.0
    %518 = vmatprep.subr.mxu0 0.0
    %519 = vmatpush2.msra.mxu0 0.0
    %520 = vmatprep.subr.mxu0 0.0
    %521 = vmatpush2.msra.mxu0 0.0
    %522 = vmatprep.subr.mxu0 0.0
    %523 = vmatpush2.msra.mxu0 0.0
    %524 = vmatprep.subr.mxu0 0.0
    %525 = vmatpush2.msra.mxu0 0.0
    %526 = vmatprep.subr.mxu0 0.0
    %527 = vmatpush2.msra.mxu0 0.0
    %528 = vmatprep.subr.mxu0 0.0
    %529 = vmatpush2.msra.mxu0 0.0
    %530 = vmatprep.subr.mxu0 0.0
    %531 = vmatpush2.msra.mxu0 0.0
    %532 = vmatprep.subr.mxu0 0.0
    %533 = vmatpush2.msra.mxu0 0.0
    %534 = vmatprep.subr.mxu0 0.0
    %535 = vmatpush2.msra.mxu0 0.0
    %536 = vmatprep.subr.mxu0 0.0
    %537 = vmatpush2.msra.mxu0 0.0
    %538 = vmatprep.mubr.f32.mxu0 0.0
    %539 = vmatmul.mubr.f32.gmra.mxu0 %v472
    %v540 = vpop.f32.mrf.mxu0
    %v541 = vadd.f32 %v267, %v540
    %v542 = vpop.f32.mrf.mxu0
    %543 = vdwg.mxu0
    %v544 = vxor.u32 %v541, 2147483648
    %v545 = vmul.f32 %v544, 1.442695
    %v546 = vpow.pop %v545
    %v547 = vadd.f32 %v546, 1.0
    %v548 = vrcp.pop %v547
    %v549 = vmul.f32 1.0, %v548
    %551 = vrot.lane.b32.xlu0 %v541, 32
    %v552 = vpop.permute.xlu0 %551
    %v554 = vmul.f32 %v549, %v552
    %556 = vrot.lane.b32.xlu0 %v554, 64
    %v557 = vpop.permute.xlu0 %556
    %v559 = vadd.f32 %v541, %v557
    %v560 = vtanh.pop %v559
    %v561 = vsub.f32 1.0, %v549
    %563 = vrot.lane.b32.xlu0 %v560, 96
    %v564 = vpop.permute.xlu0 %563
    %v566 = vmul.f32 %v561, %v564
    %v567 = vmul.f32 %v549, %v468
    %v568 = vadd.f32 %v566, %v567
    %570 = vrot.lane.b32.xlu0 %v568, 96
    %v571 = vpop.permute.xlu0 %570
    %v572 = vsel %vm161, %v571, 0
    %574 = vmatprep.subr.mxu0 0.0
    %575 = vmatpush1.msra.mxu0 0.0
    %576 = vmatprep.subr.mxu0 0.0
    %577 = vmatpush1.msra.mxu0 0.0
    %578 = vmatprep.subr.mxu0 0.0
    %579 = vmatpush1.msra.mxu0 0.0
    %580 = vmatprep.subr.mxu0 0.0
    %581 = vmatpush1.msra.mxu0 0.0
    %582 = vmatprep.subr.mxu0 0.0
    %583 = vmatpush1.msra.mxu0 0.0
    %584 = vmatprep.subr.mxu0 0.0
    %585 = vmatpush1.msra.mxu0 0.0
    %586 = vmatprep.subr.mxu0 0.0
    %587 = vmatpush1.msra.mxu0 0.0
    %588 = vmatprep.subr.mxu0 0.0
    %589 = vmatpush1.msra.mxu0 0.0
    %590 = vmatprep.subr.mxu0 0.0
    %591 = vmatpush1.msra.mxu0 0.0
    %592 = vmatprep.subr.mxu0 0.0
    %593 = vmatpush1.msra.mxu0 0.0
    %594 = vmatprep.subr.mxu0 0.0
    %595 = vmatpush1.msra.mxu0 0.0
    %596 = vmatprep.subr.mxu0 0.0
    %597 = vmatpush1.msra.mxu0 0.0
    %598 = vmatprep.subr.mxu0 0.0
    %599 = vmatpush1.msra.mxu0 %v153
    %600 = vmatprep.subr.mxu0 0.0
    %601 = vmatpush1.msra.mxu0 %v152
    %602 = vmatprep.subr.mxu0 0.0
    %603 = vmatpush1.msra.mxu0 %v151
    %604 = vmatprep.subr.mxu0 0.0
    %605 = vmatpush1.msra.mxu0 %v150
    %606 = vmatprep.subr.mxu0 0.0
    %607 = vmatpush2.msra.mxu0 0.0
    %608 = vmatprep.subr.mxu0 0.0
    %609 = vmatpush2.msra.mxu0 0.0
    %610 = vmatprep.subr.mxu0 0.0
    %611 = vmatpush2.msra.mxu0 0.0
    %612 = vmatprep.subr.mxu0 0.0
    %613 = vmatpush2.msra.mxu0 0.0
    %614 = vmatprep.subr.mxu0 0.0
    %615 = vmatpush2.msra.mxu0 0.0
    %616 = vmatprep.subr.mxu0 0.0
    %617 = vmatpush2.msra.mxu0 0.0
    %618 = vmatprep.subr.mxu0 0.0
    %619 = vmatpush2.msra.mxu0 0.0
    %620 = vmatprep.subr.mxu0 0.0
    %621 = vmatpush2.msra.mxu0 0.0
    %622 = vmatprep.subr.mxu0 0.0
    %623 = vmatpush2.msra.mxu0 0.0
    %624 = vmatprep.subr.mxu0 0.0
    %625 = vmatpush2.msra.mxu0 0.0
    %626 = vmatprep.subr.mxu0 0.0
    %627 = vmatpush2.msra.mxu0 0.0
    %628 = vmatprep.subr.mxu0 0.0
    %629 = vmatpush2.msra.mxu0 0.0
    %630 = vmatprep.subr.mxu0 0.0
    %631 = vmatpush2.msra.mxu0 0.0
    %632 = vmatprep.subr.mxu0 0.0
    %633 = vmatpush2.msra.mxu0 0.0
    %634 = vmatprep.subr.mxu0 0.0
    %635 = vmatpush2.msra.mxu0 0.0
    %636 = vmatprep.subr.mxu0 0.0
    %637 = vmatpush2.msra.mxu0 0.0
    %638 = vmatprep.mubr.f32.mxu0 0.0
    %639 = vmatmul.mubr.f32.gmra.mxu0 %v572
    %v640 = vpop.f32.mrf.mxu0
    %v641 = vadd.f32 %v267, %v640
    %v642 = vpop.f32.mrf.mxu0
    %643 = vdwg.mxu0
    %v644 = vxor.u32 %v641, 2147483648
    %v645 = vmul.f32 %v644, 1.442695
    %v646 = vpow.pop %v645
    %v647 = vadd.f32 %v646, 1.0
    %v648 = vrcp.pop %v647
    %v649 = vmul.f32 1.0, %v648
    %651 = vrot.lane.b32.xlu0 %v641, 32
    %v652 = vpop.permute.xlu0 %651
    %v654 = vmul.f32 %v649, %v652
    %656 = vrot.lane.b32.xlu0 %v654, 64
    %v657 = vpop.permute.xlu0 %656
    %v659 = vadd.f32 %v641, %v657
    %v660 = vtanh.pop %v659
    %v661 = vsub.f32 1.0, %v649
    %663 = vrot.lane.b32.xlu0 %v660, 96
    %v664 = vpop.permute.xlu0 %663
    %v666 = vmul.f32 %v661, %v664
    %v667 = vmul.f32 %v649, %v568
    %v668 = vadd.f32 %v666, %v667
    %670 = vrot.lane.b32.xlu0 %v668, 96
    %v671 = vpop.permute.xlu0 %670
    %v672 = vsel %vm161, %v671, 0
    %674 = vmatprep.subr.mxu0 0.0
    %675 = vmatpush1.msra.mxu0 0.0
    %676 = vmatprep.subr.mxu0 0.0
    %677 = vmatpush1.msra.mxu0 0.0
    %678 = vmatprep.subr.mxu0 0.0
    %679 = vmatpush1.msra.mxu0 0.0
    %680 = vmatprep.subr.mxu0 0.0
    %681 = vmatpush1.msra.mxu0 0.0
    %682 = vmatprep.subr.mxu0 0.0
    %683 = vmatpush1.msra.mxu0 0.0
    %684 = vmatprep.subr.mxu0 0.0
    %685 = vmatpush1.msra.mxu0 0.0
    %686 = vmatprep.subr.mxu0 0.0
    %687 = vmatpush1.msra.mxu0 0.0
    %688 = vmatprep.subr.mxu0 0.0
    %689 = vmatpush1.msra.mxu0 0.0
    %690 = vmatprep.subr.mxu0 0.0
    %691 = vmatpush1.msra.mxu0 0.0
    %692 = vmatprep.subr.mxu0 0.0
    %693 = vmatpush1.msra.mxu0 0.0
    %694 = vmatprep.subr.mxu0 0.0
    %695 = vmatpush1.msra.mxu0 0.0
    %696 = vmatprep.subr.mxu0 0.0
    %697 = vmatpush1.msra.mxu0 0.0
    %698 = vmatprep.subr.mxu0 0.0
    %699 = vmatpush1.msra.mxu0 %v153
    %700 = vmatprep.subr.mxu0 0.0
    %701 = vmatpush1.msra.mxu0 %v152
    %702 = vmatprep.subr.mxu0 0.0
    %703 = vmatpush1.msra.mxu0 %v151
    %704 = vmatprep.subr.mxu0 0.0
    %705 = vmatpush1.msra.mxu0 %v150
    %706 = vmatprep.subr.mxu0 0.0
    %707 = vmatpush2.msra.mxu0 0.0
    %708 = vmatprep.subr.mxu0 0.0
    %709 = vmatpush2.msra.mxu0 0.0
    %710 = vmatprep.subr.mxu0 0.0
    %711 = vmatpush2.msra.mxu0 0.0
    %712 = vmatprep.subr.mxu0 0.0
    %713 = vmatpush2.msra.mxu0 0.0
    %714 = vmatprep.subr.mxu0 0.0
    %715 = vmatpush2.msra.mxu0 0.0
    %716 = vmatprep.subr.mxu0 0.0
    %717 = vmatpush2.msra.mxu0 0.0
    %718 = vmatprep.subr.mxu0 0.0
    %719 = vmatpush2.msra.mxu0 0.0
    %720 = vmatprep.subr.mxu0 0.0
    %721 = vmatpush2.msra.mxu0 0.0
    %722 = vmatprep.subr.mxu0 0.0
    %723 = vmatpush2.msra.mxu0 0.0
    %724 = vmatprep.subr.mxu0 0.0
    %725 = vmatpush2.msra.mxu0 0.0
    %726 = vmatprep.subr.mxu0 0.0
    %727 = vmatpush2.msra.mxu0 0.0
    %728 = vmatprep.subr.mxu0 0.0
    %729 = vmatpush2.msra.mxu0 0.0
    %730 = vmatprep.subr.mxu0 0.0
    %731 = vmatpush2.msra.mxu0 0.0
    %732 = vmatprep.subr.mxu0 0.0
    %733 = vmatpush2.msra.mxu0 0.0
    %734 = vmatprep.subr.mxu0 0.0
    %735 = vmatpush2.msra.mxu0 0.0
    %736 = vmatprep.subr.mxu0 0.0
    %737 = vmatpush2.msra.mxu0 0.0
    %738 = vmatprep.mubr.f32.mxu0 0.0
    %739 = vmatmul.mubr.f32.gmra.mxu0 %v672
    %v740 = vpop.f32.mrf.mxu0
    %v741 = vadd.f32 %v267, %v740
    %v742 = vpop.f32.mrf.mxu0
    %743 = vdwg.mxu0
    %v744 = vxor.u32 %v741, 2147483648
    %v745 = vmul.f32 %v744, 1.442695
    %v746 = vpow.pop %v745
    %v747 = vadd.f32 %v746, 1.0
    %v748 = vrcp.pop %v747
    %v749 = vmul.f32 1.0, %v748
    %751 = vrot.lane.b32.xlu0 %v741, 32
    %v752 = vpop.permute.xlu0 %751
    %v754 = vmul.f32 %v749, %v752
    %756 = vrot.lane.b32.xlu0 %v754, 64
    %v757 = vpop.permute.xlu0 %756
    %v759 = vadd.f32 %v741, %v757
    %v760 = vtanh.pop %v759
    %v761 = vsub.f32 1.0, %v749
    %763 = vrot.lane.b32.xlu0 %v760, 96
    %v764 = vpop.permute.xlu0 %763
    %v766 = vmul.f32 %v761, %v764
    %v767 = vmul.f32 %v749, %v668
    %v768 = vadd.f32 %v766, %v767
    %770 = vrot.lane.b32.xlu0 %v768, 96
    %v771 = vpop.permute.xlu0 %770
    %v772 = vsel %vm161, %v771, 0
    %774 = vmatprep.subr.mxu0 0.0
    %775 = vmatpush1.msra.mxu0 0.0
    %776 = vmatprep.subr.mxu0 0.0
    %777 = vmatpush1.msra.mxu0 0.0
    %778 = vmatprep.subr.mxu0 0.0
    %779 = vmatpush1.msra.mxu0 0.0
    %780 = vmatprep.subr.mxu0 0.0
    %781 = vmatpush1.msra.mxu0 0.0
    %782 = vmatprep.subr.mxu0 0.0
    %783 = vmatpush1.msra.mxu0 0.0
    %784 = vmatprep.subr.mxu0 0.0
    %785 = vmatpush1.msra.mxu0 0.0
    %786 = vmatprep.subr.mxu0 0.0
    %787 = vmatpush1.msra.mxu0 0.0
    %788 = vmatprep.subr.mxu0 0.0
    %789 = vmatpush1.msra.mxu0 0.0
    %790 = vmatprep.subr.mxu0 0.0
    %791 = vmatpush1.msra.mxu0 0.0
    %792 = vmatprep.subr.mxu0 0.0
    %793 = vmatpush1.msra.mxu0 0.0
    %794 = vmatprep.subr.mxu0 0.0
    %795 = vmatpush1.msra.mxu0 0.0
    %796 = vmatprep.subr.mxu0 0.0
    %797 = vmatpush1.msra.mxu0 0.0
    %798 = vmatprep.subr.mxu0 0.0
    %799 = vmatpush1.msra.mxu0 %v153
    %800 = vmatprep.subr.mxu0 0.0
    %801 = vmatpush1.msra.mxu0 %v152
    %802 = vmatprep.subr.mxu0 0.0
    %803 = vmatpush1.msra.mxu0 %v151
    %804 = vmatprep.subr.mxu0 0.0
    %805 = vmatpush1.msra.mxu0 %v150
    %806 = vmatprep.subr.mxu0 0.0
    %807 = vmatpush2.msra.mxu0 0.0
    %808 = vmatprep.subr.mxu0 0.0
    %809 = vmatpush2.msra.mxu0 0.0
    %810 = vmatprep.subr.mxu0 0.0
    %811 = vmatpush2.msra.mxu0 0.0
    %812 = vmatprep.subr.mxu0 0.0
    %813 = vmatpush2.msra.mxu0 0.0
    %814 = vmatprep.subr.mxu0 0.0
    %815 = vmatpush2.msra.mxu0 0.0
    %816 = vmatprep.subr.mxu0 0.0
    %817 = vmatpush2.msra.mxu0 0.0
    %818 = vmatprep.subr.mxu0 0.0
    %819 = vmatpush2.msra.mxu0 0.0
    %820 = vmatprep.subr.mxu0 0.0
    %821 = vmatpush2.msra.mxu0 0.0
    %822 = vmatprep.subr.mxu0 0.0
    %823 = vmatpush2.msra.mxu0 0.0
    %824 = vmatprep.subr.mxu0 0.0
    %825 = vmatpush2.msra.mxu0 0.0
    %826 = vmatprep.subr.mxu0 0.0
    %827 = vmatpush2.msra.mxu0 0.0
    %828 = vmatprep.subr.mxu0 0.0
    %829 = vmatpush2.msra.mxu0 0.0
    %830 = vmatprep.subr.mxu0 0.0
    %831 = vmatpush2.msra.mxu0 0.0
    %832 = vmatprep.subr.mxu0 0.0
    %833 = vmatpush2.msra.mxu0 0.0
    %834 = vmatprep.subr.mxu0 0.0
    %835 = vmatpush2.msra.mxu0 0.0
    %836 = vmatprep.subr.mxu0 0.0
    %837 = vmatpush2.msra.mxu0 0.0
    %838 = vmatprep.mubr.f32.mxu0 0.0
    %839 = vmatmul.mubr.f32.gmra.mxu0 %v772
    %v840 = vpop.f32.mrf.mxu0
    %v841 = vadd.f32 %v267, %v840
    %v842 = vpop.f32.mrf.mxu0
    %843 = vdwg.mxu0
    %v844 = vxor.u32 %v841, 2147483648
    %v845 = vmul.f32 %v844, 1.442695
    %v846 = vpow.pop %v845
    %v847 = vadd.f32 %v846, 1.0
    %v848 = vrcp.pop %v847
    %v849 = vmul.f32 1.0, %v848
    %851 = vrot.lane.b32.xlu0 %v841, 32
    %v852 = vpop.permute.xlu0 %851
    %v854 = vmul.f32 %v849, %v852
    %856 = vrot.lane.b32.xlu0 %v854, 64
    %v857 = vpop.permute.xlu0 %856
    %v859 = vadd.f32 %v841, %v857
    %v860 = vtanh.pop %v859
    %v861 = vsub.f32 1.0, %v849
    %863 = vrot.lane.b32.xlu0 %v860, 96
    %v864 = vpop.permute.xlu0 %863
    %v866 = vmul.f32 %v861, %v864
    %v867 = vmul.f32 %v849, %v768
    %v868 = vadd.f32 %v866, %v867
    %870 = vrot.lane.b32.xlu0 %v868, 96
    %v871 = vpop.permute.xlu0 %870
    %v872 = vsel %vm161, %v871, 0
    %874 = vmatprep.subr.mxu0 0.0
    %875 = vmatpush1.msra.mxu0 0.0
    %876 = vmatprep.subr.mxu0 0.0
    %877 = vmatpush1.msra.mxu0 0.0
    %878 = vmatprep.subr.mxu0 0.0
    %879 = vmatpush1.msra.mxu0 0.0
    %880 = vmatprep.subr.mxu0 0.0
    %881 = vmatpush1.msra.mxu0 0.0
    %882 = vmatprep.subr.mxu0 0.0
    %883 = vmatpush1.msra.mxu0 0.0
    %884 = vmatprep.subr.mxu0 0.0
    %885 = vmatpush1.msra.mxu0 0.0
    %886 = vmatprep.subr.mxu0 0.0
    %887 = vmatpush1.msra.mxu0 0.0
    %888 = vmatprep.subr.mxu0 0.0
    %889 = vmatpush1.msra.mxu0 0.0
    %890 = vmatprep.subr.mxu0 0.0
    %891 = vmatpush1.msra.mxu0 0.0
    %892 = vmatprep.subr.mxu0 0.0
    %893 = vmatpush1.msra.mxu0 0.0
    %894 = vmatprep.subr.mxu0 0.0
    %895 = vmatpush1.msra.mxu0 0.0
    %896 = vmatprep.subr.mxu0 0.0
    %897 = vmatpush1.msra.mxu0 0.0
    %898 = vmatprep.subr.mxu0 0.0
    %899 = vmatpush1.msra.mxu0 %v153
    %900 = vmatprep.subr.mxu0 0.0
    %901 = vmatpush1.msra.mxu0 %v152
    %902 = vmatprep.subr.mxu0 0.0
    %903 = vmatpush1.msra.mxu0 %v151
    %904 = vmatprep.subr.mxu0 0.0
    %905 = vmatpush1.msra.mxu0 %v150
    %906 = vmatprep.subr.mxu0 0.0
    %907 = vmatpush2.msra.mxu0 0.0
    %908 = vmatprep.subr.mxu0 0.0
    %909 = vmatpush2.msra.mxu0 0.0
    %910 = vmatprep.subr.mxu0 0.0
    %911 = vmatpush2.msra.mxu0 0.0
    %912 = vmatprep.subr.mxu0 0.0
    %913 = vmatpush2.msra.mxu0 0.0
    %914 = vmatprep.subr.mxu0 0.0
    %915 = vmatpush2.msra.mxu0 0.0
    %916 = vmatprep.subr.mxu0 0.0
    %917 = vmatpush2.msra.mxu0 0.0
    %918 = vmatprep.subr.mxu0 0.0
    %919 = vmatpush2.msra.mxu0 0.0
    %920 = vmatprep.subr.mxu0 0.0
    %921 = vmatpush2.msra.mxu0 0.0
    %922 = vmatprep.subr.mxu0 0.0
    %923 = vmatpush2.msra.mxu0 0.0
    %924 = vmatprep.subr.mxu0 0.0
    %925 = vmatpush2.msra.mxu0 0.0
    %926 = vmatprep.subr.mxu0 0.0
    %927 = vmatpush2.msra.mxu0 0.0
    %928 = vmatprep.subr.mxu0 0.0
    %929 = vmatpush2.msra.mxu0 0.0
    %930 = vmatprep.subr.mxu0 0.0
    %931 = vmatpush2.msra.mxu0 0.0
    %932 = vmatprep.subr.mxu0 0.0
    %933 = vmatpush2.msra.mxu0 0.0
    %934 = vmatprep.subr.mxu0 0.0
    %935 = vmatpush2.msra.mxu0 0.0
    %936 = vmatprep.subr.mxu0 0.0
    %937 = vmatpush2.msra.mxu0 0.0
    %938 = vmatprep.mubr.f32.mxu0 0.0
    %939 = vmatmul.mubr.f32.gmra.mxu0 %v872
    %v940 = vpop.f32.mrf.mxu0
    %v941 = vadd.f32 %v267, %v940
    %v942 = vpop.f32.mrf.mxu0
    %943 = vdwg.mxu0
    %v944 = vxor.u32 %v941, 2147483648
    %v945 = vmul.f32 %v944, 1.442695
    %v946 = vpow.pop %v945
    %v947 = vadd.f32 %v946, 1.0
    %v948 = vrcp.pop %v947
    %v949 = vmul.f32 1.0, %v948
    %951 = vrot.lane.b32.xlu0 %v941, 32
    %v952 = vpop.permute.xlu0 %951
    %v954 = vmul.f32 %v949, %v952
    %956 = vrot.lane.b32.xlu0 %v954, 64
    %v957 = vpop.permute.xlu0 %956
    %v959 = vadd.f32 %v941, %v957
    %v960 = vtanh.pop %v959
    %v961 = vsub.f32 1.0, %v949
    %963 = vrot.lane.b32.xlu0 %v960, 96
    %v964 = vpop.permute.xlu0 %963
    %v966 = vmul.f32 %v961, %v964
    %v967 = vmul.f32 %v949, %v868
    %v968 = vadd.f32 %v966, %v967
    %970 = vrot.lane.b32.xlu0 %v468, 32
    %v971 = vpop.permute.xlu0 %970
    %973 = vrot.lane.b32.xlu0 %v568, 64
    %v974 = vpop.permute.xlu0 %973
    %977 = vrot.lane.b32.xlu0 %v868, 32
    %v978 = vpop.permute.xlu0 %977
    %981 = vrot.lane.b32.xlu0 %v968, 64
    %v982 = vpop.permute.xlu0 %981
    %v984 = vsel %vm161, %v271, %v368
    %v985 = vsel %vm70, %v984, %v971
    %vm986 = vcmask 785408
    %v987 = vsel %vm986, %v985, %v974
    %v988 = vsel %vm161, %v671, %v768
    %v989 = vsel %vm70, %v988, %v978
    %v990 = vsel %vm986, %v989, %v982
    %v991 = vld [vmem:[#allocation2] sm:$0xff]
    %v992 = vld [vmem:[#allocation2 + $0x8] sm:$0xff]
    %v993 = vld [vmem:[#allocation2 + $0x10] sm:$0xff]
    %v994 = vld [vmem:[#allocation2 + $0x18] sm:$0xff]
    %v995 = vld [vmem:[#allocation2 + $0x20] sm:$0xff]
    %v996 = vld [vmem:[#allocation2 + $0x28] sm:$0xff]
    %v997 = vld [vmem:[#allocation2 + $0x30] sm:$0xff]
    %v998 = vld [vmem:[#allocation2 + $0x38] sm:$0xff]
    %v999 = vld [vmem:[#allocation2 + $0x40] sm:$0xff]
    %v1000 = vld [vmem:[#allocation2 + $0x48] sm:$0xff]
    %v1001 = vld [vmem:[#allocation2 + $0x50] sm:$0xff]
    %v1002 = vld [vmem:[#allocation2 + $0x58] sm:$0xff]
    %v1003 = vld [vmem:[#allocation2 + $0x60] sm:$0xff]
    %v1004 = vld [vmem:[#allocation2 + $0x68] sm:$0xff]
    %v1005 = vld [vmem:[#allocation2 + $0x70] sm:$0xff]
    %v1006 = vld [vmem:[#allocation2 + $0x78] sm:$0xff]
    %v1007 = vld [vmem:[#allocation2 + $0x80] sm:$0xff]
    %v1008 = vld [vmem:[#allocation2 + $0x88] sm:$0xff]
    %v1009 = vld [vmem:[#allocation2 + $0x90] sm:$0xff]
    %v1010 = vld [vmem:[#allocation2 + $0x98] sm:$0xff]
    %v1011 = vld [vmem:[#allocation2 + $0xa0] sm:$0xff]
    %v1012 = vld [vmem:[#allocation2 + $0xa8] sm:$0xff]
    %v1013 = vld [vmem:[#allocation2 + $0xb0] sm:$0xff]
    %v1014 = vld [vmem:[#allocation2 + $0xb8] sm:$0xff]
    %v1015 = vld [vmem:[#allocation2 + $0xc0] sm:$0xff]
    %v1016 = vld [vmem:[#allocation2 + $0xc8] sm:$0xff]
    %v1017 = vld [vmem:[#allocation2 + $0xd0] sm:$0xff]
    %v1018 = vld [vmem:[#allocation2 + $0xd8] sm:$0xff]
    %v1019 = vld [vmem:[#allocation2 + $0xe0] sm:$0xff]
    %v1020 = vld [vmem:[#allocation2 + $0xe8] sm:$0xff]
    %v1021 = vld [vmem:[#allocation2 + $0xf0] sm:$0xff]
    %v1022 = vld [vmem:[#allocation2 + $0xf8] sm:$0xff]
    %v1023 = vld [vmem:[%s8] sm:$0x1]
    %v1025 = vlaneseq
    %v1026 = vshrl.u32 %v1025, 7
    %v1027 = vsub.s32 0, %v1026
    %v1028 = vrot.slane %v1023, %v1027
    %1030 = vmatprep.subr.mxu0 0.0
    %1031 = vmatpush1.msra.mxu0 %v1006
    %1032 = vmatprep.subr.mxu0 0.0
    %1033 = vmatpush1.msra.mxu0 %v1005
    %1034 = vmatprep.subr.mxu0 0.0
    %1035 = vmatpush1.msra.mxu0 %v1004
    %1036 = vmatprep.subr.mxu0 0.0
    %1037 = vmatpush1.msra.mxu0 %v1003
    %1038 = vmatprep.subr.mxu0 0.0
    %1039 = vmatpush1.msra.mxu0 %v1002
    %1040 = vmatprep.subr.mxu0 0.0
    %1041 = vmatpush1.msra.mxu0 %v1001
    %1042 = vmatprep.subr.mxu0 0.0
    %1043 = vmatpush1.msra.mxu0 %v1000
    %1044 = vmatprep.subr.mxu0 0.0
    %1045 = vmatpush1.msra.mxu0 %v999
    %1046 = vmatprep.subr.mxu0 0.0
    %1047 = vmatpush1.msra.mxu0 %v998
    %1048 = vmatprep.subr.mxu0 0.0
    %1049 = vmatpush1.msra.mxu0 %v997
    %1050 = vmatprep.subr.mxu0 0.0
    %1051 = vmatpush1.msra.mxu0 %v996
    %1052 = vmatprep.subr.mxu0 0.0
    %1053 = vmatpush1.msra.mxu0 %v995
    %1054 = vmatprep.subr.mxu0 0.0
    %1055 = vmatpush1.msra.mxu0 %v994
    %1056 = vmatprep.subr.mxu0 0.0
    %1057 = vmatpush1.msra.mxu0 %v993
    %1058 = vmatprep.subr.mxu0 0.0
    %1059 = vmatpush1.msra.mxu0 %v992
    %1060 = vmatprep.subr.mxu0 0.0
    %1061 = vmatpush1.msra.mxu0 %v991
    %1062 = vmatprep.subr.mxu0 0.0
    %1063 = vmatpush2.msra.mxu0 %v1022
    %1064 = vmatprep.subr.mxu0 0.0
    %1065 = vmatpush2.msra.mxu0 %v1021
    %1066 = vmatprep.subr.mxu0 0.0
    %1067 = vmatpush2.msra.mxu0 %v1020
    %1068 = vmatprep.subr.mxu0 0.0
    %1069 = vmatpush2.msra.mxu0 %v1019
    %1070 = vmatprep.subr.mxu0 0.0
    %1071 = vmatpush2.msra.mxu0 %v1018
    %1072 = vmatprep.subr.mxu0 0.0
    %1073 = vmatpush2.msra.mxu0 %v1017
    %1074 = vmatprep.subr.mxu0 0.0
    %1075 = vmatpush2.msra.mxu0 %v1016
    %1076 = vmatprep.subr.mxu0 0.0
    %1077 = vmatpush2.msra.mxu0 %v1015
    %1078 = vmatprep.subr.mxu0 0.0
    %1079 = vmatpush2.msra.mxu0 %v1014
    %1080 = vmatprep.subr.mxu0 0.0
    %1081 = vmatpush2.msra.mxu0 %v1013
    %1082 = vmatprep.subr.mxu0 0.0
    %1083 = vmatpush2.msra.mxu0 %v1012
    %1084 = vmatprep.subr.mxu0 0.0
    %1085 = vmatpush2.msra.mxu0 %v1011
    %1086 = vmatprep.subr.mxu0 0.0
    %1087 = vmatpush2.msra.mxu0 %v1010
    %1088 = vmatprep.subr.mxu0 0.0
    %1089 = vmatpush2.msra.mxu0 %v1009
    %1090 = vmatprep.subr.mxu0 0.0
    %1091 = vmatpush2.msra.mxu0 %v1008
    %1092 = vmatprep.subr.mxu0 0.0
    %1093 = vmatpush2.msra.mxu0 %v1007
    %1094 = vmatprep.mubr.f32.mxu0 %v990
    %1095 = vmatmul.mubr.f32.gmra.mxu0 %v987
    %v1096 = vpop.f32.mrf.mxu0
    %v1097 = vadd.f32 %v1028, %v1096
    %v1098 = vpop.f32.mrf.mxu0
    %1099 = vdwg.mxu0
    %1100 = vst [vmem:[%s9] sm:$0x3] %v1097
    // Predicated region
    $region42: #{date_conversion_forward.1} parent=1 // pred_check
      _
    $region43: #{date_conversion_forward.1} parent=1 // pred_check_branch
      %1102 = sbr.rel (0) target = $region45
    $region44: #{date_conversion_forward.1} parent=1 // pred_region
      _
    $region45: #{date_conversion_forward.1} parent=1 // pred_fallthru
      _
    // Predicated region
    $region46: #{date_conversion_forward.1} parent=1 // pred_check
      _
    $region47: #{date_conversion_forward.1} parent=1 // pred_check_branch
      %1104 = sbr.rel (0) target = $region49
    $region48: #{date_conversion_forward.1} parent=1 // pred_region
      _
    $region49: #{date_conversion_forward.1} parent=1 // pred_fallthru
      _
    %1105 = vsyncpa [#allocation3], 1

</llo_original>
